<compile_context>
chip_gen: v6e
topology: v6e:2x2x1
jax: 0.10.0
libtpu: 0.0.40
codegen_flags: <defaults>
</compile_context>

<pallas_src>
import functools

import jax
import jax.numpy as jnp
from jax.experimental import pallas as pl
from jax.experimental.pallas import tpu as pltpu


# ---------------------------------------------------------------------------
# Path 1: pure HBM->HBM strided DMA crop (wide W).
# ---------------------------------------------------------------------------
def _dma_crop_kernel(x_hbm, o_hbm, sems, *, tb, rem, nblocks, max_inflight,
                     pt, pl_, hout, wout):
    i = pl.program_id(0)
    base = i * tb

    def issue(nplanes):
        # Split this block into up to `max_inflight` chunks (last chunk may be
        # smaller) so several large DMAs are outstanding at once -- never
        # degenerates to a single in-flight copy for odd/prime block sizes.
        chunk = max(1, -(-nplanes // max_inflight))
        copies = []
        off = 0
        while off < nplanes:
            size = min(chunk, nplanes - off)
            copies.append(
                pltpu.make_async_copy(
                    x_hbm.at[pl.ds(base + off, size),
                             pl.ds(pt, hout),
                             pl.ds(pl_, wout)],
                    o_hbm.at[pl.ds(base + off, size)],
                    sems.at[len(copies)],
                )
            )
            off += size
        for cp in copies:
            cp.start()
        for cp in copies:
            cp.wait()

    if rem == tb:
        # nc divides evenly into blocks (or there is a single block).
        issue(tb)
    else:
        # Exact remainder handling: the last block copies `rem` planes, so no
        # two grid steps ever write the same output planes (safe under
        # "parallel" megacore sharding, no duplicated HBM traffic).
        @pl.when(i < nblocks - 1)
        def _():
            issue(tb)

        @pl.when(i == nblocks - 1)
        def _():
            issue(rem)


def _pad2d_crop_dma(xr, pt, pl_, hout, wout, *, max_inflight=8,
                    target_step_bytes=16 * 1024 * 1024):
    nc, H, W = xr.shape
    itemsize = xr.dtype.itemsize
    plane_out_bytes = hout * wout * itemsize

    # Planes cropped per grid step.  Large steps (~16 MiB of output) amortize
    # the per-step issue/drain bubble; with >1 block the "parallel" axis still
    # lets v7x's two TensorCores split the work.  Small problems collapse to a
    # single step automatically.
    tb = max(1, min(nc, target_step_bytes // max(1, plane_out_bytes)))
    nblocks = pl.cdiv(nc, tb)
    rem = nc - (nblocks - 1) * tb  # exact tail block size (1 <= rem <= tb)

    kernel = functools.partial(
        _dma_crop_kernel, tb=tb, rem=rem, nblocks=nblocks,
        max_inflight=max_inflight, pt=pt, pl_=pl_, hout=hout, wout=wout)

    return pl.pallas_call(
        kernel,
        out_shape=jax.ShapeDtypeStruct((nc, hout, wout), xr.dtype),
        grid=(nblocks,),
        in_specs=[pl.BlockSpec(memory_space=pl.ANY)],
        out_specs=pl.BlockSpec(memory_space=pl.ANY),
        scratch_shapes=[pltpu.SemaphoreType.DMA((max_inflight,))],
        compiler_params=pltpu.CompilerParams(
            dimension_semantics=("parallel",)),
    )(xr)


# ---------------------------------------------------------------------------
# Path 2: BlockSpec-pipelined VMEM crop (narrow W).
# ---------------------------------------------------------------------------
def _blocked_crop_kernel(x_ref, o_ref, *, pt, pl_, hout, wout):
    # Static crop of the VMEM tile; the output block covers the full trailing
    # dims, so its HBM writeback DMA is fully contiguous.
    o_ref[...] = x_ref[:, pt:pt + hout, pl_:pl_ + wout]


def _pad2d_crop_blocked(xr, pt, pl_, hout, wout, *,
                        vmem_budget=20 * 1024 * 1024):
    nc, H, W = xr.shape
    itemsize = xr.dtype.itemsize

    rup = lambda v, m: -(-v // m) * m
    # Padded VMEM bytes of one plane, input + output, with (8,128) tiling of
    # the last two dims.
    per_plane = (rup(H, 8) * rup(W, 128)
                 + rup(hout, 8) * rup(wout, 128)) * itemsize
    # x2 only for the pipeline's double buffering (per_plane already counts
    # input AND output) -- the old code double-counted and halved the tile.
    tb = max(1, min(nc, vmem_budget // (2 * per_plane)))
    nblocks = pl.cdiv(nc, tb)

    # TODO(synk): reading full-H planes wastes (pad_top+pad_bottom)/H of read
    # bandwidth; an Element-offset H index (or manual DMA of the contiguous
    # H-crop) would avoid it at the cost of extra kernel complexity.
    kernel = functools.partial(
        _blocked_crop_kernel, pt=pt, pl_=pl_, hout=hout, wout=wout)

    return pl.pallas_call(
        kernel,
        out_shape=jax.ShapeDtypeStruct((nc, hout, wout), xr.dtype),
        grid=(nblocks,),
        in_specs=[pl.BlockSpec((tb, H, W), lambda i: (i, 0, 0))],
        out_specs=pl.BlockSpec((tb, hout, wout), lambda i: (i, 0, 0)),
        compiler_params=pltpu.CompilerParams(
            dimension_semantics=("parallel",),
            vmem_limit_bytes=32 * 1024 * 1024),
    )(xr)


# ---------------------------------------------------------------------------
# Public wrapper (matches the PyTorch module's forward semantics).
# ---------------------------------------------------------------------------
def pad2d_transpose(x: jax.Array, padding) -> jax.Array:
    """Crop spatial dims of an NCHW tensor: x[..., pt:-pb, pl:-pr]."""
    pad_left, pad_right, pad_top, pad_bottom = padding
    # The module's negative-index slicing requires strictly positive pads.
    assert min(padding) >= 1, "x[..., pt:-pb, pl:-pr] semantics need positive pads"
    N, C, H, W = x.shape
    hout = H - pad_top - pad_bottom
    wout = W - pad_left - pad_right
    assert hout > 0 and wout > 0, "padding too large for input"

    # Flatten batch/channel into one axis (contiguous reshape, free).
    xr = x.reshape(N * C, H, W)

    # Static, trace-time path selection (jit-friendly, no host sync, no
    # dead try/except fallback).
    row_out_bytes = wout * x.dtype.itemsize
    if row_out_bytes >= 512:
        out = _pad2d_crop_dma(xr, pad_top, pad_left, hout, wout)
    else:
        out = _pad2d_crop_blocked(xr, pad_top, pad_left, hout, wout)

    return out.reshape(N, C, hout, wout)


if __name__ == "__main__":
    # Case 1: small NCHW input (narrow-W path), consistent with the module.
    key = jax.random.PRNGKey(0)
    N, C, H, W = 2, 4, 16, 16
    padding = (1, 2, 3, 1)  # (pad_left, pad_right, pad_top, pad_bottom)
    x = jax.random.normal(key, (N, C, H, W), dtype=jnp.float32)

    y = jax.block_until_ready(pad2d_transpose(x, padding))

    pl_, pr, pt, pb = padding
    y_ref = x[..., pt:H - pb, pl_:W - pr]
    assert y.shape == y_ref.shape, (y.shape, y_ref.shape)
    assert jnp.array_equal(y, y_ref), "mismatch vs reference crop (narrow-W path)"

    # Case 2: wide-W input to exercise the pure HBM->HBM DMA path.
    x2 = jax.random.normal(jax.random.PRNGKey(1), (1, 2, 16, 160),
                           dtype=jnp.float32)
    padding2 = (16, 16, 3, 1)
    y2 = jax.block_until_ready(pad2d_transpose(x2, padding2))
    y2_ref = x2[..., 3:16 - 1, 16:160 - 16]
    assert y2.shape == y2_ref.shape, (y2.shape, y2_ref.shape)
    assert jnp.array_equal(y2, y2_ref), "mismatch vs reference crop (DMA path)"

    print("KERNEL_OK")
</pallas_src>

<mosaic_0001>
module attributes {stable_mosaic.version = 11 : i64} {
  func.func @_blocked_crop_kernel(%arg0: i32, %arg1: memref<8x16x16xf32, #tpu.memory_space<vmem>>, %arg2: memref<8x12x13xf32, #tpu.memory_space<vmem>>) attributes {dimension_semantics = [#tpu.dimension_semantics<parallel>], iteration_bounds = array<i64: 1>, scalar_prefetch = 0 : i64, scratch_operands = 0 : i64, tpu.core_type = #tpu.core_type<tc>, window_params = [{transform_indices = @transform_0, window_bounds = array<i64: 8, 16, 16>}, {transform_indices = @transform_1, window_bounds = array<i64: 8, 12, 13>}]} {
    %c0 = arith.constant 0 : index
    %c3 = arith.constant 3 : index
    %c1 = arith.constant 1 : index
    %0 = vector.load %arg1[%c0, %c3, %c1] : memref<8x16x16xf32, #tpu.memory_space<vmem>>, vector<8x12x13xf32>
    %c0_0 = arith.constant 0 : index
    %c0_1 = arith.constant 0 : index
    %c0_2 = arith.constant 0 : index
    %1 = vector.load %arg2[%c0_0, %c0_1, %c0_2] : memref<8x12x13xf32, #tpu.memory_space<vmem>>, vector<8x12x13xf32>
    tpu.vector_store %arg2[%c0_0, %c0_1, %c0_2], %0 {strides = array<i32>} : memref<8x12x13xf32, #tpu.memory_space<vmem>>, vector<8x12x13xf32>,
    return
  }
  func.func @transform_0(%arg0: i32) -> (i32, i32, i32) {
    %c0_i32 = arith.constant 0 : i32
    %c0_i32_0 = arith.constant 0 : i32
    %c0_i32_1 = arith.constant 0 : i32
    return %arg0, %c0_i32, %c0_i32_0 : i32, i32, i32
  }
  func.func @transform_1(%arg0: i32) -> (i32, i32, i32) {
    %c0_i32 = arith.constant 0 : i32
    %c0_i32_0 = arith.constant 0 : i32
    %c0_i32_1 = arith.constant 0 : i32
    return %arg0, %c0_i32, %c0_i32_0 : i32, i32, i32
  }
}

</mosaic_0001>

<llo_original>
// kernel: tpu_custom_call.1
$region0: #{tpu_custom_call.1}
  #allocation0 [shape = 'u32[]', space=smem, size = 0x4, offset = 0x4, fixed_abs, tag = 'smem constant byte address 0x4 - core index']
  #allocation1 [shape = 'u32[144,128]{1,0:T(1,128)}', space=vmem, size = 0x12000, scoped, tag = 'internal scratch']
  %s0 = inlined_call_operand.hbm [shape: f32[8,16,16], index: 0, kind: input, shape index: {}]
  %s1 = inlined_call_operand.vmem [shape: f32[8,12,13], index: 1, kind: output, shape index: {}]
  %s2 = sld [smem:[#allocation0]]
  $region18: #{tpu_custom_call.1} parent=0
    _
  %s4 = ssub.s32 1, %s2
  %s5 = scalar_select 0, %s4, %s2
  $region1: #{tpu_custom_call.1} parent=0
    #allocation2 [shape = 'u8[65536]{0}', space=vmem, size = 0x10000, scoped, tag = 'input window, operand 0, single buffered']
    #allocation3 [shape = 's32[1]{0}', space=sflag, size = 0x4, scoped, tag = 'scoped memory for tpu_custom_call.1']
    %6 = vsyncpa [#allocation3], 0
    // Predicated region
    $region2: #{tpu_custom_call.1} parent=1 // pred_check
      _
    $region3: #{tpu_custom_call.1} parent=1 // pred_check_branch
      %8 = sbr.rel (0) target = $region5
    $region4: #{tpu_custom_call.1} parent=1 // pred_region
      %s10 = ssub.s32 2048, 2048
      %11 = vsyncadd [#allocation3], %s10
      %s12 = sshll.u32 [#allocation2], 4
      %s13 = int_to_ptr.vmem [resolvable:$true] %s12
      %18 = dma.hbm_to_vmem [thread:$0]  %s0, 2048, %s13, [#allocation3], 128, 128, 8
    $region5: #{tpu_custom_call.1} parent=1 // pred_fallthru
      _
    // Predicated region
    $region6: #{tpu_custom_call.1} parent=1 // pred_check
      _
    $region7: #{tpu_custom_call.1} parent=1 // pred_check_branch
      %20 = sbr.rel (0) target = $region9
    $region8: #{tpu_custom_call.1} parent=1 // pred_region
      %21 = dma.done [#allocation3], 2048
    $region9: #{tpu_custom_call.1} parent=1 // pred_fallthru
      _
    %v22 = vld [vmem:[#allocation2 + $0x3] sm:$0xff]
    %v23 = vld [vmem:[#allocation2 + $0xb] sm:$0xf]
    %v24 = vld [vmem:[#allocation2 + $0x13] sm:$0xff]
    %v25 = vld [vmem:[#allocation2 + $0x1b] sm:$0xf]
    %v26 = vld [vmem:[#allocation2 + $0x23] sm:$0xff]
    %v27 = vld [vmem:[#allocation2 + $0x2b] sm:$0xf]
    %v28 = vld [vmem:[#allocation2 + $0x33] sm:$0xff]
    %v29 = vld [vmem:[#allocation2 + $0x3b] sm:$0xf]
    %v30 = vld [vmem:[#allocation2 + $0x43] sm:$0xff]
    %v31 = vld [vmem:[#allocation2 + $0x4b] sm:$0xf]
    %v32 = vld [vmem:[#allocation2 + $0x53] sm:$0xff]
    %v33 = vld [vmem:[#allocation2 + $0x5b] sm:$0xf]
    %v34 = vld [vmem:[#allocation2 + $0x63] sm:$0xff]
    %v35 = vld [vmem:[#allocation2 + $0x6b] sm:$0xf]
    %v36 = vld [vmem:[#allocation2 + $0x73] sm:$0xff]
    %v37 = vld [vmem:[#allocation2 + $0x7b] sm:$0xf]
    %54 = vrot.lane.b32.xlu0 %v22, 127
    %v55 = vpop.permute.xlu0 %54
    %56 = vrot.lane.b32.xlu0 %v23, 127
    %v57 = vpop.permute.xlu0 %56
    %58 = vrot.lane.b32.xlu0 %v24, 127
    %v59 = vpop.permute.xlu0 %58
    %60 = vrot.lane.b32.xlu0 %v25, 127
    %v61 = vpop.permute.xlu0 %60
    %62 = vrot.lane.b32.xlu0 %v26, 127
    %v63 = vpop.permute.xlu0 %62
    %64 = vrot.lane.b32.xlu0 %v27, 127
    %v65 = vpop.permute.xlu0 %64
    %66 = vrot.lane.b32.xlu0 %v28, 127
    %v67 = vpop.permute.xlu0 %66
    %68 = vrot.lane.b32.xlu0 %v29, 127
    %v69 = vpop.permute.xlu0 %68
    %70 = vrot.lane.b32.xlu0 %v30, 127
    %v71 = vpop.permute.xlu0 %70
    %72 = vrot.lane.b32.xlu0 %v31, 127
    %v73 = vpop.permute.xlu0 %72
    %74 = vrot.lane.b32.xlu0 %v32, 127
    %v75 = vpop.permute.xlu0 %74
    %76 = vrot.lane.b32.xlu0 %v33, 127
    %v77 = vpop.permute.xlu0 %76
    %78 = vrot.lane.b32.xlu0 %v34, 127
    %v79 = vpop.permute.xlu0 %78
    %80 = vrot.lane.b32.xlu0 %v35, 127
    %v81 = vpop.permute.xlu0 %80
    %82 = vrot.lane.b32.xlu0 %v36, 127
    %v83 = vpop.permute.xlu0 %82
    %84 = vrot.lane.b32.xlu0 %v37, 127
    %v85 = vpop.permute.xlu0 %84
    %vm102 = vcmask 105472
    %103 = vst.msk [vmem:[%s1] sm:$0xff] %vm102, %v55
    %vm104 = vcmask 101376
    %105 = vst.msk [vmem:[%s1 + $0x8] sm:$0xf] %vm104, %v57
    %106 = vst.msk [vmem:[%s1 + $0x10] sm:$0xff] %vm102, %v59
    %107 = vst.msk [vmem:[%s1 + $0x18] sm:$0xf] %vm104, %v61
    %108 = vst.msk [vmem:[%s1 + $0x20] sm:$0xff] %vm102, %v63
    %109 = vst.msk [vmem:[%s1 + $0x28] sm:$0xf] %vm104, %v65
    %110 = vst.msk [vmem:[%s1 + $0x30] sm:$0xff] %vm102, %v67
    %111 = vst.msk [vmem:[%s1 + $0x38] sm:$0xf] %vm104, %v69
    %112 = vst.msk [vmem:[%s1 + $0x40] sm:$0xff] %vm102, %v71
    %113 = vst.msk [vmem:[%s1 + $0x48] sm:$0xf] %vm104, %v73
    %114 = vst.msk [vmem:[%s1 + $0x50] sm:$0xff] %vm102, %v75
    %115 = vst.msk [vmem:[%s1 + $0x58] sm:$0xf] %vm104, %v77
    %116 = vst.msk [vmem:[%s1 + $0x60] sm:$0xff] %vm102, %v79
    %117 = vst.msk [vmem:[%s1 + $0x68] sm:$0xf] %vm104, %v81
    %118 = vst.msk [vmem:[%s1 + $0x70] sm:$0xff] %vm102, %v83
    %119 = vst.msk [vmem:[%s1 + $0x78] sm:$0xf] %vm104, %v85
    // Predicated region
    $region10: #{tpu_custom_call.1} parent=1 // pred_check
      _
    $region11: #{tpu_custom_call.1} parent=1 // pred_check_branch
      %121 = sbr.rel (0) target = $region13
    $region12: #{tpu_custom_call.1} parent=1 // pred_region
      _
    $region13: #{tpu_custom_call.1} parent=1 // pred_fallthru
      _
    // Predicated region
    $region14: #{tpu_custom_call.1} parent=1 // pred_check
      _
    $region15: #{tpu_custom_call.1} parent=1 // pred_check_branch
      %123 = sbr.rel (0) target = $region17
    $region16: #{tpu_custom_call.1} parent=1 // pred_region
      _
    $region17: #{tpu_custom_call.1} parent=1 // pred_fallthru
      _
    %124 = vsyncpa [#allocation3], 1

</llo_original>
